<compile_context>
chip_gen: v7x
topology: tpu7x:2x2x1
jax: 0.10.0
libtpu: 0.0.40
codegen_flags: <defaults>
</compile_context>

<pallas_src>
import math

import jax
import jax.numpy as jnp
from jax.experimental import pallas as pl
from jax.experimental.pallas import tpu as pltpu


# ----------------------------------------------------------------------------
# Hoisted packed projection:  out[d] = x @ w[d] + b[d]   (one big MXU matmul
# per weight set; used for the encoder input projections and decoder context).
# ----------------------------------------------------------------------------
def _proj_kernel(x_ref, w_ref, b_ref, o_ref):
    o_ref[...] = (
        jnp.dot(x_ref[...], w_ref[...], preferred_element_type=jnp.float32)
        + b_ref[...]
    ).astype(o_ref.dtype)


def packed_projection(x2d, w_stack, b_stack):
    """x2d: (N, I); w_stack: (D, I, 3H); b_stack: (D, 1, 3H) -> (D, N, 3H)."""
    N, I = x2d.shape
    D, _, H3 = w_stack.shape
    return pl.pallas_call(
        _proj_kernel,
        out_shape=jax.ShapeDtypeStruct((D, N, H3), jnp.float32),
        grid=(D,),
        in_specs=[
            pl.BlockSpec((N, I), lambda d: (0, 0)),
            pl.BlockSpec((None, I, H3), lambda d: (d, 0, 0)),
            pl.BlockSpec((None, 1, H3), lambda d: (d, 0, 0)),
        ],
        out_specs=pl.BlockSpec((None, N, H3), lambda d: (d, 0, 0)),
        compiler_params=pltpu.CompilerParams(dimension_semantics=("parallel",)),
    )(x2d, w_stack, b_stack)


# ----------------------------------------------------------------------------
# Bidirectional GRU layer. grid = (2 directions,) marked "parallel".
# Per direction the whole time recurrence runs in one lax.fori_loop; only the
# unavoidable h @ W_hh (single fused 3H-wide matmul) is inside the loop.
# ----------------------------------------------------------------------------
def _bigru_kernel(gi_ref, whh_ref, bhh_ref, y_ref, hN_ref):
    # gi_ref: (T, B, 3H) precomputed x @ W_ih + b_ih ;  whh_ref: (H, 3H)
    # y_ref: (T, B, H) outputs ; hN_ref: (B, H) final hidden
    T, B, H = y_ref.shape
    d = pl.program_id(0)
    reverse = d == 1

    whh = whh_ref[...]
    bhh = bhh_ref[...]

    def step(t, h):
        idx = jnp.where(reverse, T - 1 - t, t)
        gi = gi_ref[idx]                                            # (B, 3H)
        gh = jnp.dot(h, whh, preferred_element_type=jnp.float32) + bhh
        r = jax.nn.sigmoid(gi[:, 0:H] + gh[:, 0:H])
        z = jax.nn.sigmoid(gi[:, H:2 * H] + gh[:, H:2 * H])
        n = jnp.tanh(gi[:, 2 * H:3 * H] + r * gh[:, 2 * H:3 * H])
        h_new = (1.0 - z) * n + z * h
        y_ref[idx] = h_new.astype(y_ref.dtype)
        return h_new

    h_fin = jax.lax.fori_loop(0, T, step, jnp.zeros((B, H), jnp.float32))
    hN_ref[...] = h_fin.astype(hN_ref.dtype)


def bigru_layer(x_tm, wih, whh, bih, bhh):
    """x_tm: (T, B, I). Returns y: (2, T, B, H) (PyTorch order), hN: (2, B, H)."""
    T, B, I = x_tm.shape
    H = whh.shape[1]
    H3 = 3 * H

    # Hoisted input projection for BOTH directions: (T*B) rows through the MXU.
    gi = packed_projection(x_tm.reshape(T * B, I), wih, bih)        # (2, T*B, 3H)
    gi = gi.reshape(2, T, B, H3)

    y, h_fin = pl.pallas_call(
        _bigru_kernel,
        out_shape=(
            jax.ShapeDtypeStruct((2, T, B, H), jnp.float32),
            jax.ShapeDtypeStruct((2, B, H), jnp.float32),
        ),
        grid=(2,),
        in_specs=[
            pl.BlockSpec((None, T, B, H3), lambda d: (d, 0, 0, 0)),
            pl.BlockSpec((None, H, H3), lambda d: (d, 0, 0)),
            pl.BlockSpec((None, 1, H3), lambda d: (d, 0, 0)),
        ],
        out_specs=[
            pl.BlockSpec((None, T, B, H), lambda d: (d, 0, 0, 0)),
            pl.BlockSpec((None, B, H), lambda d: (d, 0, 0)),
        ],
        compiler_params=pltpu.CompilerParams(dimension_semantics=("parallel",)),
    )(gi, whh, bhh)
    return y, h_fin


# ----------------------------------------------------------------------------
# Decoder: GRU cell + LayerNorm + Linear per step, scheduled sampling.
# Single pallas_call; the whole autoregressive loop is a lax.fori_loop.
# The (time-invariant) context projection is precomputed and passed in.
# ----------------------------------------------------------------------------
def _decoder_kernel(tf_ref, gt_ref, ctxgi_ref, wihp_ref, whh_ref, bhh_ref,
                    gamma_ref, beta_ref, fcw_ref, fcb_ref, out_ref):
    T, B, P = out_ref.shape
    H = whh_ref.shape[0]

    wihp = wihp_ref[...]      # (P, 3H)
    whh = whh_ref[...]        # (H, 3H)
    bhh = bhh_ref[...]        # (1, 3H)
    ctx_gi = ctxgi_ref[...]   # (B, 3H)  = ctx @ W_ih_ctx + b_ih (hoisted)
    gamma = gamma_ref[...]    # (1, H)
    beta = beta_ref[...]      # (1, H)
    fcw = fcw_ref[...]        # (H, P)
    fcb = fcb_ref[...]        # (1, P)

    def step(t, carry):
        h, prev = carry
        gi = jnp.dot(prev, wihp, preferred_element_type=jnp.float32) + ctx_gi
        gh = jnp.dot(h, whh, preferred_element_type=jnp.float32) + bhh
        r = jax.nn.sigmoid(gi[:, 0:H] + gh[:, 0:H])
        z = jax.nn.sigmoid(gi[:, H:2 * H] + gh[:, H:2 * H])
        n = jnp.tanh(gi[:, 2 * H:3 * H] + r * gh[:, 2 * H:3 * H])
        h_new = (1.0 - z) * n + z * h

        # LayerNorm(hidden_dim), eps = 1e-5
        mean = jnp.mean(h_new, axis=-1, keepdims=True)
        var = jnp.mean(jnp.square(h_new - mean), axis=-1, keepdims=True)
        normed = (h_new - mean) * jax.lax.rsqrt(var + 1e-5) * gamma + beta

        next_pose = jnp.dot(normed, fcw, preferred_element_type=jnp.float32) + fcb
        out_ref[t] = next_pose.astype(out_ref.dtype)

        # scheduled sampling: teacher-force if tf_mask[t] else feed back pred
        prev_new = jnp.where(tf_ref[t] > 0, gt_ref[t].astype(jnp.float32), next_pose)
        return h_new, prev_new

    h0 = jnp.zeros((B, H), jnp.float32)            # hidden = None -> zeros
    prev0 = gt_ref[0].astype(jnp.float32)          # prev_pose = ground_truth[:, :1, :]
    jax.lax.fori_loop(0, T, step, (h0, prev0))


def decoder_run(tf_mask, gt_tm, ctx_gi, dec, ln_gamma, ln_beta, fc_w, fc_b):
    """gt_tm: (T, B, P), ctx_gi: (B, 3H). Returns poses (T, B, P)."""
    T, B, P = gt_tm.shape
    vmem = pl.BlockSpec(memory_space=pltpu.MemorySpace.VMEM)
    smem = pl.BlockSpec(memory_space=pltpu.MemorySpace.SMEM)

    return pl.pallas_call(
        _decoder_kernel,
        out_shape=jax.ShapeDtypeStruct((T, B, P), jnp.float32),
        in_specs=[smem, vmem, vmem, vmem, vmem, vmem, vmem, vmem, vmem, vmem],
        out_specs=vmem,
    )(tf_mask, gt_tm, ctx_gi,
      dec["wih_pose"], dec["whh"], dec["bhh"],
      ln_gamma, ln_beta, fc_w, fc_b)


# ----------------------------------------------------------------------------
# Parameter init (deterministic, PyTorch-style uniform(-1/sqrt(H), 1/sqrt(H)))
# ----------------------------------------------------------------------------
def init_params(key, gloss_dim, output_dim, hidden_dim):
    H, P = hidden_dim, output_dim
    k = 1.0 / math.sqrt(H)
    keys = iter(jax.random.split(key, 64))

    def u(shape):
        return jax.random.uniform(next(keys), shape, jnp.float32, -k, k)

    enc = []
    for layer in range(2):
        in_dim = gloss_dim if layer == 0 else 2 * H
        enc.append(dict(wih=u((2, in_dim, 3 * H)), whh=u((2, H, 3 * H)),
                        bih=u((2, 1, 3 * H)), bhh=u((2, 1, 3 * H))))

    params = dict(
        encoder=enc,
        dec=dict(wih_pose=u((P, 3 * H)), wih_ctx=u((2 * H, 3 * H)),
                 whh=u((H, 3 * H)), bih=u((1, 3 * H)), bhh=u((1, 3 * H))),
        ln_gamma=jnp.ones((1, H), jnp.float32),
        ln_beta=jnp.zeros((1, H), jnp.float32),
        fc_w=u((H, P)),
        fc_b=u((1, P)),
        initial_pose=jnp.zeros((1, 1, P), jnp.float32),  # unused in forward()
    )
    return params


# ----------------------------------------------------------------------------
# Full forward == RNN.forward(gloss_emb, ground_truth, epoch, total_epochs)
# ----------------------------------------------------------------------------
def rnn_forward(params, gloss_emb, ground_truth, epoch, total_epochs, sample_key):
    B, T, _G = gloss_emb.shape
    x_tm = jnp.transpose(gloss_emb, (1, 0, 2))       # (T, B, gloss_dim)
    enc = params["encoder"]

    # encoder layer 0 (bidirectional): outputs feed layer 1
    y0, _ = bigru_layer(x_tm, enc[0]["wih"], enc[0]["whh"], enc[0]["bih"], enc[0]["bhh"])
    y0cat = jnp.concatenate([y0[0], y0[1]], axis=-1)  # (T, B, 2H)
    # TODO(synk): nn.GRU(dropout=0.2) between layers (train mode only) not applied; eval semantics.

    # encoder layer 1 (bidirectional): only final hidden states needed (h[-2], h[-1])
    _, h1 = bigru_layer(y0cat, enc[1]["wih"], enc[1]["whh"], enc[1]["bih"], enc[1]["bhh"])
    ctx = jnp.concatenate([h1[0], h1[1]], axis=-1)    # (B, 2H)

    p_tf = total_epochs / (total_epochs + math.exp(epoch / total_epochs))
    # TODO(synk): python random.random() scheduled-sampling stream replaced by a
    # deterministic jax.random draw compared against the same p_tf.
    tf_mask = (jax.random.uniform(sample_key, (T,)) < p_tf).astype(jnp.int32)

    dec = params["dec"]
    # hoisted, time-invariant decoder-input context projection (+ folded b_ih)
    ctx_gi = packed_projection(ctx, dec["wih_ctx"][None], dec["bih"][None])[0]  # (B, 3H)

    gt_tm = jnp.transpose(ground_truth, (1, 0, 2))    # (T, B, P)
    poses_tm = decoder_run(tf_mask, gt_tm, ctx_gi, dec,
                           params["ln_gamma"], params["ln_beta"],
                           params["fc_w"], params["fc_b"])
    return jnp.transpose(poses_tm, (1, 0, 2)), p_tf   # (B, T, P), float


if __name__ == "__main__":
    B, T = 2, 8
    gloss_dim, hidden_dim, output_dim = 16, 32, 8

    key = jax.random.PRNGKey(0)
    pkey, xkey, gkey, skey = jax.random.split(key, 4)

    params = init_params(pkey, gloss_dim, output_dim, hidden_dim)
    gloss_emb = jax.random.normal(xkey, (B, T, gloss_dim), jnp.float32)
    ground_truth = jax.random.normal(gkey, (B, T, output_dim), jnp.float32)

    out, p_tf = rnn_forward(params, gloss_emb, ground_truth,
                            epoch=1, total_epochs=10, sample_key=skey)
    out = jax.block_until_ready(out)
    assert out.shape == (B, T, output_dim), out.shape
    assert bool(jnp.all(jnp.isfinite(out)))
    print("KERNEL_OK")
</pallas_src>

<mosaic_0001>
module attributes {stable_mosaic.version = 11 : i64} {
  func.func @_proj_kernel(%arg0: i32, %arg1: memref<16x16xf32, #tpu.memory_space<vmem>>, %arg2: memref<1x16x96xf32, #tpu.memory_space<vmem>>, %arg3: memref<1x1x96xf32, #tpu.memory_space<vmem>>, %arg4: memref<1x16x96xf32, #tpu.memory_space<vmem>>) attributes {dimension_semantics = [#tpu.dimension_semantics<parallel>], iteration_bounds = array<i64: 2>, scalar_prefetch = 0 : i64, scratch_operands = 0 : i64, tpu.core_type = #tpu.core_type<tc>, window_params = [{pipeline_mode = #tpu.pipeline_mode<synchronous>, transform_indices = @transform_0, window_bounds = array<i64: 16, 16>}, {transform_indices = @transform_1, window_bounds = array<i64: 1, 16, 96>}, {transform_indices = @transform_2, window_bounds = array<i64: 1, 1, 96>}, {transform_indices = @transform_3, window_bounds = array<i64: 1, 16, 96>}]} {
    %c0 = arith.constant 0 : index
    %c0_0 = arith.constant 0 : index
    %0 = vector.load %arg1[%c0, %c0_0] : memref<16x16xf32, #tpu.memory_space<vmem>>, vector<16x16xf32>
    %c0_1 = arith.constant 0 : index
    %c0_2 = arith.constant 0 : index
    %c0_3 = arith.constant 0 : index
    %1 = vector.load %arg2[%c0_1, %c0_2, %c0_3] : memref<1x16x96xf32, #tpu.memory_space<vmem>>, vector<1x16x96xf32>
    %2 = vector.shape_cast %1 : vector<1x16x96xf32> to vector<16x96xf32>
    %cst = arith.constant dense<0.000000e+00> : vector<16x96xf32>
    %3 = tpu.matmul %0, %2, %cst {dimension_numbers = #tpu.dot_dimension_numbers<[1], [0], [0], [1], [0, 0, 1, 1], [], []>} : vector<16x16xf32>, vector<16x96xf32>, vector<16x96xf32> -> vector<16x96xf32>
    %c0_4 = arith.constant 0 : index
    %c0_5 = arith.constant 0 : index
    %c0_6 = arith.constant 0 : index
    %4 = vector.load %arg3[%c0_4, %c0_5, %c0_6] : memref<1x1x96xf32, #tpu.memory_space<vmem>>, vector<1x1x96xf32>
    %5 = vector.shape_cast %4 : vector<1x1x96xf32> to vector<1x96xf32>
    %6 = vector.broadcast %5 : vector<1x96xf32> to vector<16x96xf32>
    %7 = arith.addf %3, %6 : vector<16x96xf32>
    %c0_7 = arith.constant 0 : index
    %c0_8 = arith.constant 0 : index
    %c0_9 = arith.constant 0 : index
    %8 = vector.load %arg4[%c0_7, %c0_8, %c0_9] : memref<1x16x96xf32, #tpu.memory_space<vmem>>, vector<1x16x96xf32>
    %9 = vector.shape_cast %8 : vector<1x16x96xf32> to vector<16x96xf32>
    %10 = vector.shape_cast %7 : vector<16x96xf32> to vector<1x16x96xf32>
    tpu.vector_store %arg4[%c0_7, %c0_8, %c0_9], %10 {strides = array<i32>} : memref<1x16x96xf32, #tpu.memory_space<vmem>>, vector<1x16x96xf32>,
    return
  }
  func.func @transform_0(%arg0: i32) -> (i32, i32) {
    %c0_i32 = arith.constant 0 : i32
    %c0_i32_0 = arith.constant 0 : i32
    %c0_i32_1 = arith.constant 0 : i32
    return %c0_i32, %c0_i32_0 : i32, i32
  }
  func.func @transform_1(%arg0: i32) -> (i32, i32, i32) {
    %c0_i32 = arith.constant 0 : i32
    %c0_i32_0 = arith.constant 0 : i32
    %c0_i32_1 = arith.constant 0 : i32
    return %arg0, %c0_i32, %c0_i32_0 : i32, i32, i32
  }
  func.func @transform_2(%arg0: i32) -> (i32, i32, i32) {
    %c0_i32 = arith.constant 0 : i32
    %c0_i32_0 = arith.constant 0 : i32
    %c0_i32_1 = arith.constant 0 : i32
    return %arg0, %c0_i32, %c0_i32_0 : i32, i32, i32
  }
  func.func @transform_3(%arg0: i32) -> (i32, i32, i32) {
    %c0_i32 = arith.constant 0 : i32
    %c0_i32_0 = arith.constant 0 : i32
    %c0_i32_1 = arith.constant 0 : i32
    return %arg0, %c0_i32, %c0_i32_0 : i32, i32, i32
  }
}

</mosaic_0001>

<llo_original>
// kernel: tpu_custom_call.1
$region0: #{tpu_custom_call.1}
  #allocation0 [shape = 'u32[]', space=smem, size = 0x4, offset = 0x4, fixed_abs, tag = 'smem constant byte address 0x4 - core index']
  #allocation1 [shape = 'u32[144,128]{1,0:T(1,128)}', space=vmem, size = 0x12000, scoped, tag = 'internal scratch']
  %s0 = inlined_call_operand.hbm [shape: f32[16,16], index: 0, kind: input, shape index: {}]
  %s1 = inlined_call_operand.hbm [shape: f32[2,16,96], index: 1, kind: input, shape index: {}]
  %s2 = inlined_call_operand.vmem [shape: f32[2,1,96], index: 2, kind: input, shape index: {}]
  %s3 = inlined_call_operand.hbm [shape: f32[2,16,96], index: 3, kind: output, shape index: {}]
  %s4 = sld [smem:[#allocation0]]
  $region53: #{tpu_custom_call.1} parent=0
    _
  %s6 = ssub.s32 1, %s4
  %s7 = scalar_select 0, %s6, %s4
  $region1: #{tpu_custom_call.1} parent=0
    #allocation2 [shape = 'u8[8192]{0}', space=vmem, size = 0x2000, scoped, tag = 'input window, operand 0, single buffered']
    #allocation3 [shape = 's32[2]{0}', space=sflag, size = 0x8, scoped, tag = 'scoped memory for tpu_custom_call.1']
    #allocation4 [shape = 's32[2]{0}', space=sflag, size = 0x8, scoped, tag = 'scoped memory for tpu_custom_call.1']
    #allocation5 [shape = 'u8[16384]{0}', space=vmem, size = 0x4000, scoped, tag = 'input window, operand 1']
    #allocation6 [shape = 's32[2]{0}', space=sflag, size = 0x8, scoped, tag = 'scoped memory for tpu_custom_call.1']
    #allocation7 [shape = 'u8[16384]{0}', space=vmem, size = 0x4000, scoped, tag = 'output window, operand 0']
    %8 = vsyncpa [#allocation3], 0
    %9 = vsyncpa [#allocation6], 0
    %s10 = scalar_lea.sflag [#allocation6], 1
    %11 = vsyncpa %s10, 0
    %12 = vsyncpa [#allocation4], 0
    %s13 = scalar_lea.sflag [#allocation4], 1
    %14 = vsyncpa %s13, 0
    loop: start=0, step=1, limit=4
    $region2: #{tpu_custom_call.1} parent=1 // loop_pre_header
      _
    $region3: #{tpu_custom_call.1} parent=1 // loop_header
      %s16 = sphi 0, %s20
      %p17 = scmp.ge.s32.totalorder %s16, 4
      %s24 = sphi 0, %s24
      %s26 = sphi 0, %s24
      %s27 = sphi 0, %s26
      %s41 = sphi 0, %s27
      %s47 = sphi 0, %s49
      %s50 = sphi 0, %s47
      %s51 = sphi 0, %s50
      %s67 = sphi 0, %s51
      %s73 = sphi 0, %s75
      %s76 = sphi 0, %s73
      %s77 = sphi 0, %s76
      %s93 = sphi 0, %s77
      %s99 = sphi 0, %s101
      %s102 = sphi 0, %s99
      %s103 = sphi 0, %s102
      %s119 = sphi 0, %s103
    $region4: #{tpu_custom_call.1} parent=1 // loop_header_branch
      %19 = sbr.rel (%p17) target = $region8
    $region5: #{tpu_custom_call.1} parent=1 // loop_body
      %s21 = ssub.s32 %s16, 1
      %s22 = ssub.s32 %s16, 2
      %s23 = sadd.s32 %s16, 1
      %s25 = sadd.s32 %s24, 1
      %p28 = scmp.eq.s32.totalorder %s16, 1
      %p29 = scmp.ne.s32.totalorder %s24, %s26
      %p30 = scmp.eq.s32.totalorder %s16, 0
      %p31 = por %p29, %p30
      %p32 = scmp.ne.s32.totalorder %s24, %s26
      %p33 = scmp.eq.s32.totalorder %s21, 1
      %p34 = por %p32, %p33
      %p35 = scmp.ne.s32.totalorder %s26, %s27
      %p36 = scmp.eq.s32.totalorder %s21, 0
      %p37 = por %p35, %p36
      %p38 = scmp.ne.s32.totalorder %s26, %s27
      %p39 = scmp.eq.s32.totalorder %s22, 1
      %p40 = por %p38, %p39
      %p42 = scmp.ne.s32.totalorder %s27, %s41
      %p43 = scmp.eq.s32.totalorder %s22, 0
      %p44 = por %p42, %p43
      %s45 = ssub.s32 %s16, %s23
      %p46 = scmp.eq.s32.totalorder %s45, 0
      %s48 = sadd.s32 %s47, 1
      %s49 = scalar_select %p46, %s47, %s48
      %p52 = pneg %p46
      %p53 = scmp.eq.s32.totalorder %s16, 1
      %p54 = por %p52, %p53
      %p55 = scmp.ne.s32.totalorder %s47, %s50
      %p56 = scmp.eq.s32.totalorder %s16, 0
      %p57 = por %p55, %p56
      %p58 = scmp.ne.s32.totalorder %s47, %s50
      %p59 = scmp.eq.s32.totalorder %s21, 1
      %p60 = por %p58, %p59
      %p61 = scmp.ne.s32.totalorder %s50, %s51
      %p62 = scmp.eq.s32.totalorder %s21, 0
      %p63 = por %p61, %p62
      %p64 = scmp.ne.s32.totalorder %s50, %s51
      %p65 = scmp.eq.s32.totalorder %s22, 1
      %p66 = por %p64, %p65
      %p68 = scmp.ne.s32.totalorder %s51, %s67
      %p69 = scmp.eq.s32.totalorder %s22, 0
      %p70 = por %p68, %p69
      %s71 = ssub.s32 %s16, %s23
      %p72 = scmp.eq.s32.totalorder %s71, 0
      %s74 = sadd.s32 %s73, 1
      %s75 = scalar_select %p72, %s73, %s74
      %p78 = pneg %p72
      %p79 = scmp.eq.s32.totalorder %s16, 1
      %p80 = por %p78, %p79
      %p81 = scmp.ne.s32.totalorder %s73, %s76
      %p82 = scmp.eq.s32.totalorder %s16, 0
      %p83 = por %p81, %p82
      %p84 = scmp.ne.s32.totalorder %s73, %s76
      %p85 = scmp.eq.s32.totalorder %s21, 1
      %p86 = por %p84, %p85
      %p87 = scmp.ne.s32.totalorder %s76, %s77
      %p88 = scmp.eq.s32.totalorder %s21, 0
      %p89 = por %p87, %p88
      %p90 = scmp.ne.s32.totalorder %s76, %s77
      %p91 = scmp.eq.s32.totalorder %s22, 1
      %p92 = por %p90, %p91
      %p94 = scmp.ne.s32.totalorder %s77, %s93
      %p95 = scmp.eq.s32.totalorder %s22, 0
      %p96 = por %p94, %p95
      %s97 = ssub.s32 %s16, %s23
      %p98 = scmp.eq.s32.totalorder %s97, 0
      %s100 = sadd.s32 %s99, 1
      %s101 = scalar_select %p98, %s99, %s100
      %p104 = pneg %p98
      %p105 = scmp.eq.s32.totalorder %s16, 1
      %p106 = por %p104, %p105
      %p107 = scmp.ne.s32.totalorder %s99, %s102
      %p108 = scmp.eq.s32.totalorder %s16, 0
      %p109 = por %p107, %p108
      %p110 = scmp.ne.s32.totalorder %s99, %s102
      %p111 = scmp.eq.s32.totalorder %s21, 1
      %p112 = por %p110, %p111
      %p113 = scmp.ne.s32.totalorder %s102, %s103
      %p114 = scmp.eq.s32.totalorder %s21, 0
      %p115 = por %p113, %p114
      %p116 = scmp.ne.s32.totalorder %s102, %s103
      %p117 = scmp.eq.s32.totalorder %s22, 1
      %p118 = por %p116, %p117
      %p120 = scmp.ne.s32.totalorder %s103, %s119
      %p121 = scmp.eq.s32.totalorder %s22, 0
      %p122 = por %p120, %p121
      %p123 = scmp.le.s32.totalorder 1, %s16
      %p124 = scmp.lt.s32.totalorder %s16, 3
      %p125 = pnand %p123, %p124
      %p126 = pneg %p125
      // Predicated region
      $region9: #{tpu_custom_call.1} parent=5 // pred_check
        _
      $region10: #{tpu_custom_call.1} parent=5 // pred_check_branch
        %128 = sbr.rel (%p125) target = $region12
      $region11: #{tpu_custom_call.1} parent=5 // pred_region
        %s129 = ssub.s32 %s16, 1
        // Predicated region
        $region13: #{tpu_custom_call.1} parent=11 // pred_check
          %p130 = pneg %p37
        $region14: #{tpu_custom_call.1} parent=11 // pred_check_branch
          %132 = sbr.rel (%p130) target = $region16
        $region15: #{tpu_custom_call.1} parent=11 // pred_region
          %s134 = ssub.s32 256, 256
          %135 = vsyncadd [#allocation3], %s134
          %s136 = sshll.u32 [#allocation2], 4
          %s137 = int_to_ptr.vmem [resolvable:$true] %s136
          %142 = dma.hbm_to_vmem [thread:$0]  %s0, 256, %s137, [#allocation3], 128, 128, 8
        $region16: #{tpu_custom_call.1} parent=11 // pred_fallthru
          _
      $region12: #{tpu_custom_call.1} parent=5 // pred_fallthru
        _
      %p143 = scmp.lt.s32.totalorder %s16, 2
      // Predicated region
      $region17: #{tpu_custom_call.1} parent=5 // pred_check
        %p144 = pneg %p143
      $region18: #{tpu_custom_call.1} parent=5 // pred_check_branch
        %146 = sbr.rel (%p144) target = $region20
      $region19: #{tpu_custom_call.1} parent=5 // pred_region
        // Predicated region
        $region21: #{tpu_custom_call.1} parent=19 // pred_check
          %p147 = pneg %p57
        $region22: #{tpu_custom_call.1} parent=19 // pred_check_branch
          %149 = sbr.rel (%p147) target = $region24
        $region23: #{tpu_custom_call.1} parent=19 // pred_region
          %s150 = sand.u32 %s47, 1
          %s151 = scalar_lea.sflag [#allocation6], %s150
          %s152 = sand.u32 %s47, 1
          %s153 = smul.addr %s152, 16
          %s154 = scalar_lea.vmem [#allocation5], %s153
          %s156 = ssub.s32 256, 256
          %157 = vsyncadd %s151, %s156
          %s158 = smul.addr %s16, 2
          %s159 = smul.addr %s158, 128
          %s160 = scalar_lea.hbm %s1, %s159
          %s161 = sshll.u32 %s154, 4
          %s162 = int_to_ptr.vmem [resolvable:$true] %s161
          %167 = dma.hbm_to_vmem [thread:$0]  %s160, 256, %s162, %s151, 128, 128, 8
        $region24: #{tpu_custom_call.1} parent=19 // pred_fallthru
          _
        // Predicated region
        $region25: #{tpu_custom_call.1} parent=19 // pred_check
          %p168 = pneg %p83
        $region26: #{tpu_custom_call.1} parent=19 // pred_check_branch
          %170 = sbr.rel (%p168) target = $region28
        $region27: #{tpu_custom_call.1} parent=19 // pred_region
          %p171 = scmp.lt.s32.totalorder %s16, 1
          %s172 = scalar_select %p171, %s16, 1
          %s173 = scalar_lea.vmem %s2, %s172
        $region28: #{tpu_custom_call.1} parent=19 // pred_fallthru
          _
      $region20: #{tpu_custom_call.1} parent=5 // pred_fallthru
        _
      %p174 = scmp.le.s32.totalorder 1, %s16
      %p175 = scmp.lt.s32.totalorder %s16, 3
      %p176 = pnand %p174, %p175
      %p177 = pneg %p176
      // Predicated region
      $region29: #{tpu_custom_call.1} parent=5 // pred_check
        _
      $region30: #{tpu_custom_call.1} parent=5 // pred_check_branch
        %179 = sbr.rel (%p176) target = $region32
      $region31: #{tpu_custom_call.1} parent=5 // pred_region
        %s180 = ssub.s32 %s16, 1
        // Predicated region
        $region33: #{tpu_custom_call.1} parent=31 // pred_check
          %p181 = pneg %p37
        $region34: #{tpu_custom_call.1} parent=31 // pred_check_branch
          %183 = sbr.rel (%p181) target = $region36
        $region35: #{tpu_custom_call.1} parent=31 // pred_region
          %184 = dma.done [#allocation3], 256
        $region36: #{tpu_custom_call.1} parent=31 // pred_fallthru
          _
        %s185 = sand.u32 %s50, 1
        %s186 = scalar_lea.sflag [#allocation6], %s185
        %s187 = sand.u32 %s50, 1
        %s188 = smul.addr %s187, 16
        %s189 = scalar_lea.vmem [#allocation5], %s188
        // Predicated region
        $region37: #{tpu_custom_call.1} parent=31 // pred_check
          %p190 = pneg %p63
        $region38: #{tpu_custom_call.1} parent=31 // pred_check_branch
          %192 = sbr.rel (%p190) target = $region40
        $region39: #{tpu_custom_call.1} parent=31 // pred_region
          %193 = dma.done %s186, 256
        $region40: #{tpu_custom_call.1} parent=31 // pred_fallthru
          _
        %p194 = pneg %p37
        %p195 = pneg %p34
        %s196 = sand.u32 %s50, 1
        %s197 = scalar_lea.sflag [#allocation6], %s196
        %s198 = sand.u32 %s50, 1
        %s199 = smul.addr %s198, 16
        %s200 = scalar_lea.vmem [#allocation5], %s199
        %p201 = pneg %p63
        %p202 = pneg %p60
        %p203 = scmp.lt.s32.totalorder %s21, 1
        %s204 = scalar_select %p203, %s21, 1
        %s205 = scalar_lea.vmem %s2, %s204
        %p206 = pneg %p89
        %p207 = pneg %p86
        %p208 = pneg %p115
        %p209 = pneg %p112
        %s210 = sand.u32 %s102, 1
        %s211 = scalar_lea.sflag [#allocation4], %s210
        %s212 = sand.u32 %s102, 1
        %s213 = smul.addr %s212, 16
        %s214 = scalar_lea.vmem [#allocation7], %s213
        %p215 = scmp.lt.s32.totalorder %s21, 1
        %s216 = scalar_select %p215, %s21, 1
        %s217 = scalar_lea.vmem %s2, %s216
        %v218 = vld [vmem:[#allocation2] sm:$0xff]
        %v219 = vld [vmem:[#allocation2 + $0x8] sm:$0xff]
        %v220 = vld [vmem:[%s189] sm:$0xff]
        %v221 = vld [vmem:[%s189 + $0x8] sm:$0xff]
        %v222 = vld [vmem:[%s217] sm:$0x1]
        %v224 = vlaneseq
        %v225 = vshrl.u32 %v224, 7
        %v226 = vsub.s32 0, %v225
        %v227 = vrot.slane %v222, %v226
        %vm229 = vcmask 130048
        %v231 = vsel %vm229, %v218, 0
        %v234 = vsel %vm229, %v219, 0
        %236 = vmatprep.subr.mxu0 0.0
        %237 = vmatpush1.msra.mxu0 %v220
        %238 = vmatprep.subr.mxu0 0.0
        %239 = vmatpush1.msra.mxu0 %v221
        %240 = vmatprep.subr.mxu0 0.0
        %241 = vmatpush1.msra.mxu0 0.0
        %242 = vmatprep.subr.mxu0 0.0
        %243 = vmatpush1.msra.mxu0 0.0
        %244 = vmatprep.subr.mxu0 0.0
        %245 = vmatpush1.msra.mxu0 0.0
        %246 = vmatprep.subr.mxu0 0.0
        %247 = vmatpush1.msra.mxu0 0.0
        %248 = vmatprep.subr.mxu0 0.0
        %249 = vmatpush1.msra.mxu0 0.0
        %250 = vmatprep.subr.mxu0 0.0
        %251 = vmatpush1.msra.mxu0 0.0
        %252 = vmatprep.subr.mxu0 0.0
        %253 = vmatpush1.msra.mxu0 0.0
        %254 = vmatprep.subr.mxu0 0.0
        %255 = vmatpush1.msra.mxu0 0.0
        %256 = vmatprep.subr.mxu0 0.0
        %257 = vmatpush1.msra.mxu0 0.0
        %258 = vmatprep.subr.mxu0 0.0
        %259 = vmatpush1.msra.mxu0 0.0
        %260 = vmatprep.subr.mxu0 0.0
        %261 = vmatpush1.msra.mxu0 0.0
        %262 = vmatprep.subr.mxu0 0.0
        %263 = vmatpush1.msra.mxu0 0.0
        %264 = vmatprep.subr.mxu0 0.0
        %265 = vmatpush1.msra.mxu0 0.0
        %266 = vmatprep.subr.mxu0 0.0
        %267 = vmatpush1.msra.mxu0 0.0
        %268 = vmatprep.subr.mxu0 0.0
        %269 = vmatpush1.msra.mxu0 0.0
        %270 = vmatprep.subr.mxu0 0.0
        %271 = vmatpush1.msra.mxu0 0.0
        %272 = vmatprep.subr.mxu0 0.0
        %273 = vmatpush1.msra.mxu0 0.0
        %274 = vmatprep.subr.mxu0 0.0
        %275 = vmatpush1.msra.mxu0 0.0
        %276 = vmatprep.subr.mxu0 0.0
        %277 = vmatpush1.msra.mxu0 0.0
        %278 = vmatprep.subr.mxu0 0.0
        %279 = vmatpush1.msra.mxu0 0.0
        %280 = vmatprep.subr.mxu0 0.0
        %281 = vmatpush1.msra.mxu0 0.0
        %282 = vmatprep.subr.mxu0 0.0
        %283 = vmatpush1.msra.mxu0 0.0
        %284 = vmatprep.subr.mxu0 0.0
        %285 = vmatpush1.msra.mxu0 0.0
        %286 = vmatprep.subr.mxu0 0.0
        %287 = vmatpush1.msra.mxu0 0.0
        %288 = vmatprep.subr.mxu0 0.0
        %289 = vmatpush1.msra.mxu0 0.0
        %290 = vmatprep.subr.mxu0 0.0
        %291 = vmatpush1.msra.mxu0 0.0
        %292 = vmatprep.subr.mxu0 0.0
        %293 = vmatpush1.msra.mxu0 0.0
        %294 = vmatprep.subr.mxu0 0.0
        %295 = vmatpush1.msra.mxu0 0.0
        %296 = vmatprep.subr.mxu0 0.0
        %297 = vmatpush1.msra.mxu0 0.0
        %298 = vmatprep.subr.mxu0 0.0
        %299 = vmatpush1.msra.mxu0 0.0
        %300 = vmatprep.mubr.f32.mxu0 0.0
        %301 = vmatmul.mubr.f32.gmra.mrb[0].mxu0 %v231
        %v302 = vpop.f32.mrb[0].mxu0
        %v303 = vadd.f32 %v227, %v302
        %v304 = vpop.f32.mrb[0].mxu0
        %305 = vmatprep.mubr.f32.mxu0 0.0
        %306 = vmatmul.mubr.f32.gmra.mrb[0].mxu0 %v234
        %v307 = vpop.f32.mrb[0].mxu0
        %v308 = vadd.f32 %v227, %v307
        %v309 = vpop.f32.mrb[0].mxu0
        %310 = vdwg.mxu0
        %vm311 = vcmask 785408
        %312 = vst.msk [vmem:[%s214] sm:$0xff] %vm311, %v303
        %313 = vst.msk [vmem:[%s214 + $0x8] sm:$0xff] %vm311, %v308
        %s314 = sand.u32 %s102, 1
        %s315 = scalar_lea.sflag [#allocation4], %s314
        %s316 = sand.u32 %s102, 1
        %s317 = smul.addr %s316, 16
        %s318 = scalar_lea.vmem [#allocation7], %s317
        // Predicated region
        $region41: #{tpu_custom_call.1} parent=31 // pred_check
          %p319 = pneg %p112
        $region42: #{tpu_custom_call.1} parent=31 // pred_check_branch
          %321 = sbr.rel (%p319) target = $region44
        $region43: #{tpu_custom_call.1} parent=31 // pred_region
          %s323 = ssub.s32 256, 256
          %324 = vsyncadd %s315, %s323
          %s325 = smul.addr %s21, 2
          %s326 = smul.addr %s325, 128
          %s327 = scalar_lea.hbm %s3, %s326
          %s328 = sshll.u32 %s318, 4
          %s329 = int_to_ptr.vmem [resolvable:$true] %s328
          %334 = dma.vmem_to_hbm [thread:$0]  %s329, 256, %s327, %s315, 128, 128, 8
        $region44: #{tpu_custom_call.1} parent=31 // pred_fallthru
          _
      $region32: #{tpu_custom_call.1} parent=5 // pred_fallthru
        _
      %p335 = scmp.le.s32.totalorder 2, %s16
      // Predicated region
      $region45: #{tpu_custom_call.1} parent=5 // pred_check
        %p336 = pneg %p335
      $region46: #{tpu_custom_call.1} parent=5 // pred_check_branch
        %338 = sbr.rel (%p336) target = $region48
      $region47: #{tpu_custom_call.1} parent=5 // pred_region
        %s339 = ssub.s32 %s16, 2
        // Predicated region
        $region49: #{tpu_custom_call.1} parent=47 // pred_check
          %p340 = pneg %p118
        $region50: #{tpu_custom_call.1} parent=47 // pred_check_branch
          %342 = sbr.rel (%p340) target = $region52
        $region51: #{tpu_custom_call.1} parent=47 // pred_region
          %s343 = sand.u32 %s103, 1
          %s344 = scalar_lea.sflag [#allocation4], %s343
          %s345 = sand.u32 %s103, 1
          %s346 = smul.addr %s345, 16
          %s347 = scalar_lea.vmem [#allocation7], %s346
          %348 = dma.done %s344, 256
        $region52: #{tpu_custom_call.1} parent=47 // pred_fallthru
          _
      $region48: #{tpu_custom_call.1} parent=5 // pred_fallthru
        _
    $region6: #{tpu_custom_call.1} parent=1 // loop_footer
      %s20 = sadd.s32 1, %s16
    $region7: #{tpu_custom_call.1} parent=1 // loop_footer_branch
      %15 = sbr.rel target = $region3
    $region8: #{tpu_custom_call.1} parent=1 // loop_exit
      _
    %349 = vsyncpa [#allocation3], 1
    %s350 = scalar_lea.sflag [#allocation3], 1
    %351 = vsyncpa %s350, 1
    %352 = vsyncpa [#allocation6], 1
    %s353 = scalar_lea.sflag [#allocation6], 1
    %354 = vsyncpa %s353, 1
    %355 = vsyncpa [#allocation4], 1
    %s356 = scalar_lea.sflag [#allocation4], 1
    %357 = vsyncpa %s356, 1

</llo_original>
